<compile_context>
chip_gen: v7x
topology: tpu7x:2x2x1
jax: 0.10.0
libtpu: 0.0.40
codegen_flags: <defaults>
</compile_context>

<pallas_src>
import jax
import jax.numpy as jnp
from jax.experimental import pallas as pl
from jax.experimental.pallas import tpu as pltpu


def _round_up(x, m):
    return (x + m - 1) // m * m


def _down_conv_kernel(x_ref, w_ref, b_ref, o_ref):
    """One grid step = one (image, output-row-block) tile of the stride-2 3x3 conv.

    x_ref: (1, th+1, Wo+1, 4*Cin)  space-to-depth input tile (+1 row/col halo), bf16
    w_ref: (9, Cin, Cout_p)        tap-major weights, resident in VMEM, bf16
    b_ref: (1, Cout_p)             f32 bias, resident
    o_ref: (1, th, Wo, Cout_p)     lane-dense output tile
    """
    _, th_p1, wo_p1, c4 = x_ref.shape
    th, wo = th_p1 - 1, wo_p1 - 1
    cin = c4 // 4
    cout_p = o_ref.shape[-1]

    acc = jnp.zeros((th * wo, cout_p), jnp.float32)
    # Fused im2col: 9 taps, each a (th*Wo, Cin) x (Cin, Cout_p) MXU dot.
    for kh in range(3):
        dr, rp = kh // 2, kh % 2          # row offset into halo / row parity
        for kw in range(3):
            dc, cp = kw // 2, kw % 2      # col offset into halo / col parity
            cs = (rp * 2 + cp) * cin
            tap = x_ref[0, dr:dr + th, dc:dc + wo, cs:cs + cin]   # (th, Wo, Cin)
            acc += jnp.dot(tap.reshape(th * wo, cin), w_ref[kh * 3 + kw],
                           preferred_element_type=jnp.float32)
    acc += b_ref[...]                     # f32 bias add, broadcast over rows
    o_ref[0] = acc.reshape(th, wo, cout_p).astype(o_ref.dtype)


def down_block_forward_nhwc(x_nhwc, weight, bias, *, compute_dtype=jnp.bfloat16):
    """Conv2d(kernel=3, stride=2, padding=1) on NHWC input, returns NHWC output.

    x_nhwc: (N, H, W, Cin); weight: (Cout, Cin, 3, 3) (PyTorch OIHW); bias: (Cout,)
    """
    N, H, W, Cin = x_nhwc.shape
    Cout, Cin_w, KH, KW = weight.shape
    assert Cin == Cin_w and KH == 3 and KW == 3
    Ho = (H - 1) // 2 + 1
    Wo = (W - 1) // 2 + 1
    Cout_p = _round_up(Cout, 128)          # lane-dense output stores

    # Row-block tile: each grid step does a (th*Wo, Cin) x (Cin, Cout_p) matmul
    # (large tiles -> grid-step overhead amortized).
    th = max(1, min(Ho, 2048 // max(Wo, 1)))
    nrb = pl.cdiv(Ho, th)
    # NOTE(v7x): for best 2-TensorCore utilization, prefer an even number of
    # grid steps (N*nrb); the "parallel" semantics below shards them across TCs.

    # ---- JAX glue (fused by XLA): zero-pad + space-to-depth. No im2col buffer.
    Hp, Wp = 2 * (Ho + 1), 2 * (Wo + 1)
    x_pad = jnp.pad(x_nhwc, ((0, 0), (1, Hp - 1 - H), (1, Wp - 1 - W), (0, 0)))
    # x_s2d[n, i, j, (rp*2+cp)*Cin + c] == x_pad[n, 2i+rp, 2j+cp, c]
    x_s2d = (x_pad.reshape(N, Ho + 1, 2, Wo + 1, 2, Cin)
             .transpose(0, 1, 3, 2, 4, 5)
             .reshape(N, Ho + 1, Wo + 1, 4 * Cin))
    # Pad rows so every row-block has its +1 halo row available.
    rows_needed = nrb * th + 1
    if rows_needed > Ho + 1:
        x_s2d = jnp.pad(x_s2d, ((0, 0), (0, rows_needed - (Ho + 1)), (0, 0), (0, 0)))
    if nrb == 1:
        x_blk = x_s2d[:, None]
    else:
        x_blk = jnp.stack([x_s2d[:, r * th:r * th + th + 1] for r in range(nrb)], axis=1)
    x_blk = x_blk.reshape(N * nrb, th + 1, Wo + 1, 4 * Cin).astype(compute_dtype)

    # Weights: OIHW -> (kh, kw, Cin, Cout) -> tap-major (9, Cin, Cout_p), bf16.
    w_taps = jnp.transpose(weight, (2, 3, 1, 0))
    w_taps = jnp.pad(w_taps, ((0, 0), (0, 0), (0, 0), (0, Cout_p - Cout)))
    w_taps = w_taps.reshape(9, Cin, Cout_p).astype(compute_dtype)
    b_row = jnp.pad(bias, (0, Cout_p - Cout)).astype(jnp.float32).reshape(1, Cout_p)

    flops = 2 * N * Ho * Wo * 9 * Cin * Cout_p
    bytes_accessed = int(x_blk.size * x_blk.dtype.itemsize
                         + w_taps.size * w_taps.dtype.itemsize
                         + N * nrb * th * Wo * Cout_p * jnp.dtype(x_nhwc.dtype).itemsize)

    out = pl.pallas_call(
        _down_conv_kernel,
        out_shape=jax.ShapeDtypeStruct((N * nrb, th, Wo, Cout_p), x_nhwc.dtype),
        grid_spec=pltpu.PrefetchScalarGridSpec(
            num_scalar_prefetch=0,
            grid=(N * nrb,),
            in_specs=[
                # space-to-depth input tile with halo (last two dims = full extent)
                pl.BlockSpec((1, th + 1, Wo + 1, 4 * Cin), lambda i: (i, 0, 0, 0)),
                # resident tap-major weights
                pl.BlockSpec((9, Cin, Cout_p), lambda i: (0, 0, 0)),
                # resident f32 bias, lane-dense
                pl.BlockSpec((1, Cout_p), lambda i: (0, 0)),
            ],
            out_specs=pl.BlockSpec((1, th, Wo, Cout_p), lambda i: (i, 0, 0, 0)),
        ),
        compiler_params=pltpu.CompilerParams(
            dimension_semantics=("parallel",),
            vmem_limit_bytes=48 * 1024 * 1024,   # safe on v5e/v6e (128 MiB) and v7x (64 MiB)
        ),
        cost_estimate=pl.CostEstimate(flops=flops, transcendentals=0,
                                      bytes_accessed=bytes_accessed),
    )(x_blk, w_taps, b_row)

    # Reshape the slab (free) and drop M/Cout padding; stay in NHWC.
    out = out.reshape(N, nrb * th, Wo, Cout_p)[:, :Ho, :, :Cout]
    return out


def down_block_forward(x_nchw, weight, bias, *, compute_dtype=jnp.bfloat16):
    """PyTorch-interface wrapper (NCHW in / NCHW out). If this block sits inside a
    larger model, prefer down_block_forward_nhwc to avoid the two transposes."""
    x_nhwc = jnp.transpose(x_nchw, (0, 2, 3, 1))
    y = down_block_forward_nhwc(x_nhwc, weight, bias, compute_dtype=compute_dtype)
    return jnp.transpose(y, (0, 3, 1, 2))


def init_down_block_params(key, in_channels, out_channels):
    """Deterministic init mirroring nn.Conv2d default (uniform +/- 1/sqrt(fan_in))."""
    k_w, k_b = jax.random.split(key)
    fan_in = in_channels * 3 * 3
    bound = 1.0 / jnp.sqrt(jnp.float32(fan_in))
    weight = jax.random.uniform(k_w, (out_channels, in_channels, 3, 3),
                                minval=-bound, maxval=bound, dtype=jnp.float32)
    bias = jax.random.uniform(k_b, (out_channels,),
                              minval=-bound, maxval=bound, dtype=jnp.float32)
    return weight, bias


if __name__ == "__main__":
    key = jax.random.PRNGKey(0)
    k_x, k_p = jax.random.split(key)

    N, Cin, H, W = 2, 4, 16, 16
    Cout = 8

    x = jax.random.normal(k_x, (N, Cin, H, W), dtype=jnp.float32)
    weight, bias = init_down_block_params(k_p, Cin, Cout)

    fwd = jax.jit(down_block_forward)
    y = jax.block_until_ready(fwd(x, weight, bias))

    # reference check against XLA's conv (bf16 MXU inputs -> loosened tolerance)
    ref = jax.lax.conv_general_dilated(
        x, weight, window_strides=(2, 2), padding=((1, 1), (1, 1)),
        dimension_numbers=("NCHW", "OIHW", "NCHW")) + bias.reshape(1, -1, 1, 1)
    assert y.shape == (N, Cout, H // 2, W // 2), y.shape
    max_err = float(jnp.max(jnp.abs(y - ref)))
    assert jnp.allclose(y, ref, atol=2e-2, rtol=2e-2), max_err

    print("KERNEL_OK")
</pallas_src>

<mosaic_0001>
module attributes {stable_mosaic.version = 11 : i64} {
  func.func @_down_conv_kernel(%arg0: i32, %arg1: memref<1x9x9x16xbf16, #tpu.memory_space<vmem>>, %arg2: memref<9x4x128xbf16, #tpu.memory_space<vmem>>, %arg3: memref<1x128xf32, #tpu.memory_space<vmem>>, %arg4: memref<1x8x8x128xf32, #tpu.memory_space<vmem>>) attributes {dimension_semantics = [#tpu.dimension_semantics<parallel>], iteration_bounds = array<i64: 2>, scalar_prefetch = 0 : i64, scratch_operands = 0 : i64, tpu.core_type = #tpu.core_type<tc>, window_params = [{transform_indices = @transform_0, window_bounds = array<i64: 1, 9, 9, 16>}, {pipeline_mode = #tpu.pipeline_mode<synchronous>, transform_indices = @transform_1, window_bounds = array<i64: 9, 4, 128>}, {pipeline_mode = #tpu.pipeline_mode<synchronous>, transform_indices = @transform_2, window_bounds = array<i64: 1, 128>}, {transform_indices = @transform_3, window_bounds = array<i64: 1, 8, 8, 128>}]} {
    %cst = arith.constant 0.000000e+00 : f32
    %0 = vector.broadcast %cst : f32 to vector<64x128xf32>
    %c0 = arith.constant 0 : index
    %c0_0 = arith.constant 0 : index
    %c0_1 = arith.constant 0 : index
    %c0_2 = arith.constant 0 : index
    %1 = vector.load %arg1[%c0, %c0_0, %c0_1, %c0_2] : memref<1x9x9x16xbf16, #tpu.memory_space<vmem>>, vector<1x8x8x4xbf16>
    %2 = vector.shape_cast %1 : vector<1x8x8x4xbf16> to vector<8x8x4xbf16>
    %3 = vector.shape_cast %2 : vector<8x8x4xbf16> to vector<64x4xbf16>
    %c0_3 = arith.constant 0 : index
    %c0_4 = arith.constant 0 : index
    %c0_5 = arith.constant 0 : index
    %4 = vector.load %arg2[%c0_3, %c0_4, %c0_5] : memref<9x4x128xbf16, #tpu.memory_space<vmem>>, vector<1x4x128xbf16>
    %5 = vector.shape_cast %4 : vector<1x4x128xbf16> to vector<4x128xbf16>
    %cst_6 = arith.constant dense<0.000000e+00> : vector<64x128xf32>
    %6 = tpu.matmul %3, %5, %cst_6 {dimension_numbers = #tpu.dot_dimension_numbers<[1], [0], [0], [1], [0, 0, 1, 1], [], []>} : vector<64x4xbf16>, vector<4x128xbf16>, vector<64x128xf32> -> vector<64x128xf32>
    %7 = arith.addf %0, %6 : vector<64x128xf32>
    %c0_7 = arith.constant 0 : index
    %c0_8 = arith.constant 0 : index
    %c0_9 = arith.constant 0 : index
    %c4 = arith.constant 4 : index
    %8 = vector.load %arg1[%c0_7, %c0_8, %c0_9, %c4] : memref<1x9x9x16xbf16, #tpu.memory_space<vmem>>, vector<1x8x8x4xbf16>
    %9 = vector.shape_cast %8 : vector<1x8x8x4xbf16> to vector<8x8x4xbf16>
    %10 = vector.shape_cast %9 : vector<8x8x4xbf16> to vector<64x4xbf16>
    %c1 = arith.constant 1 : index
    %c0_10 = arith.constant 0 : index
    %c0_11 = arith.constant 0 : index
    %11 = vector.load %arg2[%c1, %c0_10, %c0_11] : memref<9x4x128xbf16, #tpu.memory_space<vmem>>, vector<1x4x128xbf16>
    %12 = vector.shape_cast %11 : vector<1x4x128xbf16> to vector<4x128xbf16>
    %cst_12 = arith.constant dense<0.000000e+00> : vector<64x128xf32>
    %13 = tpu.matmul %10, %12, %cst_12 {dimension_numbers = #tpu.dot_dimension_numbers<[1], [0], [0], [1], [0, 0, 1, 1], [], []>} : vector<64x4xbf16>, vector<4x128xbf16>, vector<64x128xf32> -> vector<64x128xf32>
    %14 = arith.addf %7, %13 : vector<64x128xf32>
    %c0_13 = arith.constant 0 : index
    %c0_14 = arith.constant 0 : index
    %c1_15 = arith.constant 1 : index
    %c0_16 = arith.constant 0 : index
    %15 = vector.load %arg1[%c0_13, %c0_14, %c1_15, %c0_16] : memref<1x9x9x16xbf16, #tpu.memory_space<vmem>>, vector<1x8x8x4xbf16>
    %16 = vector.shape_cast %15 : vector<1x8x8x4xbf16> to vector<8x8x4xbf16>
    %17 = vector.shape_cast %16 : vector<8x8x4xbf16> to vector<64x4xbf16>
    %c2 = arith.constant 2 : index
    %c0_17 = arith.constant 0 : index
    %c0_18 = arith.constant 0 : index
    %18 = vector.load %arg2[%c2, %c0_17, %c0_18] : memref<9x4x128xbf16, #tpu.memory_space<vmem>>, vector<1x4x128xbf16>
    %19 = vector.shape_cast %18 : vector<1x4x128xbf16> to vector<4x128xbf16>
    %cst_19 = arith.constant dense<0.000000e+00> : vector<64x128xf32>
    %20 = tpu.matmul %17, %19, %cst_19 {dimension_numbers = #tpu.dot_dimension_numbers<[1], [0], [0], [1], [0, 0, 1, 1], [], []>} : vector<64x4xbf16>, vector<4x128xbf16>, vector<64x128xf32> -> vector<64x128xf32>
    %21 = arith.addf %14, %20 : vector<64x128xf32>
    %c0_20 = arith.constant 0 : index
    %c0_21 = arith.constant 0 : index
    %c0_22 = arith.constant 0 : index
    %c8 = arith.constant 8 : index
    %22 = vector.load %arg1[%c0_20, %c0_21, %c0_22, %c8] : memref<1x9x9x16xbf16, #tpu.memory_space<vmem>>, vector<1x8x8x4xbf16>
    %23 = vector.shape_cast %22 : vector<1x8x8x4xbf16> to vector<8x8x4xbf16>
    %24 = vector.shape_cast %23 : vector<8x8x4xbf16> to vector<64x4xbf16>
    %c3 = arith.constant 3 : index
    %c0_23 = arith.constant 0 : index
    %c0_24 = arith.constant 0 : index
    %25 = vector.load %arg2[%c3, %c0_23, %c0_24] : memref<9x4x128xbf16, #tpu.memory_space<vmem>>, vector<1x4x128xbf16>
    %26 = vector.shape_cast %25 : vector<1x4x128xbf16> to vector<4x128xbf16>
    %cst_25 = arith.constant dense<0.000000e+00> : vector<64x128xf32>
    %27 = tpu.matmul %24, %26, %cst_25 {dimension_numbers = #tpu.dot_dimension_numbers<[1], [0], [0], [1], [0, 0, 1, 1], [], []>} : vector<64x4xbf16>, vector<4x128xbf16>, vector<64x128xf32> -> vector<64x128xf32>
    %28 = arith.addf %21, %27 : vector<64x128xf32>
    %c0_26 = arith.constant 0 : index
    %c0_27 = arith.constant 0 : index
    %c0_28 = arith.constant 0 : index
    %c12 = arith.constant 12 : index
    %29 = vector.load %arg1[%c0_26, %c0_27, %c0_28, %c12] : memref<1x9x9x16xbf16, #tpu.memory_space<vmem>>, vector<1x8x8x4xbf16>
    %30 = vector.shape_cast %29 : vector<1x8x8x4xbf16> to vector<8x8x4xbf16>
    %31 = vector.shape_cast %30 : vector<8x8x4xbf16> to vector<64x4xbf16>
    %c4_29 = arith.constant 4 : index
    %c0_30 = arith.constant 0 : index
    %c0_31 = arith.constant 0 : index
    %32 = vector.load %arg2[%c4_29, %c0_30, %c0_31] : memref<9x4x128xbf16, #tpu.memory_space<vmem>>, vector<1x4x128xbf16>
    %33 = vector.shape_cast %32 : vector<1x4x128xbf16> to vector<4x128xbf16>
    %cst_32 = arith.constant dense<0.000000e+00> : vector<64x128xf32>
    %34 = tpu.matmul %31, %33, %cst_32 {dimension_numbers = #tpu.dot_dimension_numbers<[1], [0], [0], [1], [0, 0, 1, 1], [], []>} : vector<64x4xbf16>, vector<4x128xbf16>, vector<64x128xf32> -> vector<64x128xf32>
    %35 = arith.addf %28, %34 : vector<64x128xf32>
    %c0_33 = arith.constant 0 : index
    %c0_34 = arith.constant 0 : index
    %c1_35 = arith.constant 1 : index
    %c8_36 = arith.constant 8 : index
    %36 = vector.load %arg1[%c0_33, %c0_34, %c1_35, %c8_36] : memref<1x9x9x16xbf16, #tpu.memory_space<vmem>>, vector<1x8x8x4xbf16>
    %37 = vector.shape_cast %36 : vector<1x8x8x4xbf16> to vector<8x8x4xbf16>
    %38 = vector.shape_cast %37 : vector<8x8x4xbf16> to vector<64x4xbf16>
    %c5 = arith.constant 5 : index
    %c0_37 = arith.constant 0 : index
    %c0_38 = arith.constant 0 : index
    %39 = vector.load %arg2[%c5, %c0_37, %c0_38] : memref<9x4x128xbf16, #tpu.memory_space<vmem>>, vector<1x4x128xbf16>
    %40 = vector.shape_cast %39 : vector<1x4x128xbf16> to vector<4x128xbf16>
    %cst_39 = arith.constant dense<0.000000e+00> : vector<64x128xf32>
    %41 = tpu.matmul %38, %40, %cst_39 {dimension_numbers = #tpu.dot_dimension_numbers<[1], [0], [0], [1], [0, 0, 1, 1], [], []>} : vector<64x4xbf16>, vector<4x128xbf16>, vector<64x128xf32> -> vector<64x128xf32>
    %42 = arith.addf %35, %41 : vector<64x128xf32>
    %c0_40 = arith.constant 0 : index
    %c1_41 = arith.constant 1 : index
    %c0_42 = arith.constant 0 : index
    %c0_43 = arith.constant 0 : index
    %43 = vector.load %arg1[%c0_40, %c1_41, %c0_42, %c0_43] : memref<1x9x9x16xbf16, #tpu.memory_space<vmem>>, vector<1x8x8x4xbf16>
    %44 = vector.shape_cast %43 : vector<1x8x8x4xbf16> to vector<8x8x4xbf16>
    %45 = vector.shape_cast %44 : vector<8x8x4xbf16> to vector<64x4xbf16>
    %c6 = arith.constant 6 : index
    %c0_44 = arith.constant 0 : index
    %c0_45 = arith.constant 0 : index
    %46 = vector.load %arg2[%c6, %c0_44, %c0_45] : memref<9x4x128xbf16, #tpu.memory_space<vmem>>, vector<1x4x128xbf16>
    %47 = vector.shape_cast %46 : vector<1x4x128xbf16> to vector<4x128xbf16>
    %cst_46 = arith.constant dense<0.000000e+00> : vector<64x128xf32>
    %48 = tpu.matmul %45, %47, %cst_46 {dimension_numbers = #tpu.dot_dimension_numbers<[1], [0], [0], [1], [0, 0, 1, 1], [], []>} : vector<64x4xbf16>, vector<4x128xbf16>, vector<64x128xf32> -> vector<64x128xf32>
    %49 = arith.addf %42, %48 : vector<64x128xf32>
    %c0_47 = arith.constant 0 : index
    %c1_48 = arith.constant 1 : index
    %c0_49 = arith.constant 0 : index
    %c4_50 = arith.constant 4 : index
    %50 = vector.load %arg1[%c0_47, %c1_48, %c0_49, %c4_50] : memref<1x9x9x16xbf16, #tpu.memory_space<vmem>>, vector<1x8x8x4xbf16>
    %51 = vector.shape_cast %50 : vector<1x8x8x4xbf16> to vector<8x8x4xbf16>
    %52 = vector.shape_cast %51 : vector<8x8x4xbf16> to vector<64x4xbf16>
    %c7 = arith.constant 7 : index
    %c0_51 = arith.constant 0 : index
    %c0_52 = arith.constant 0 : index
    %53 = vector.load %arg2[%c7, %c0_51, %c0_52] : memref<9x4x128xbf16, #tpu.memory_space<vmem>>, vector<1x4x128xbf16>
    %54 = vector.shape_cast %53 : vector<1x4x128xbf16> to vector<4x128xbf16>
    %cst_53 = arith.constant dense<0.000000e+00> : vector<64x128xf32>
    %55 = tpu.matmul %52, %54, %cst_53 {dimension_numbers = #tpu.dot_dimension_numbers<[1], [0], [0], [1], [0, 0, 1, 1], [], []>} : vector<64x4xbf16>, vector<4x128xbf16>, vector<64x128xf32> -> vector<64x128xf32>
    %56 = arith.addf %49, %55 : vector<64x128xf32>
    %c0_54 = arith.constant 0 : index
    %c1_55 = arith.constant 1 : index
    %c1_56 = arith.constant 1 : index
    %c0_57 = arith.constant 0 : index
    %57 = vector.load %arg1[%c0_54, %c1_55, %c1_56, %c0_57] : memref<1x9x9x16xbf16, #tpu.memory_space<vmem>>, vector<1x8x8x4xbf16>
    %58 = vector.shape_cast %57 : vector<1x8x8x4xbf16> to vector<8x8x4xbf16>
    %59 = vector.shape_cast %58 : vector<8x8x4xbf16> to vector<64x4xbf16>
    %c8_58 = arith.constant 8 : index
    %c0_59 = arith.constant 0 : index
    %c0_60 = arith.constant 0 : index
    %60 = vector.load %arg2[%c8_58, %c0_59, %c0_60] : memref<9x4x128xbf16, #tpu.memory_space<vmem>>, vector<1x4x128xbf16>
    %61 = vector.shape_cast %60 : vector<1x4x128xbf16> to vector<4x128xbf16>
    %cst_61 = arith.constant dense<0.000000e+00> : vector<64x128xf32>
    %62 = tpu.matmul %59, %61, %cst_61 {dimension_numbers = #tpu.dot_dimension_numbers<[1], [0], [0], [1], [0, 0, 1, 1], [], []>} : vector<64x4xbf16>, vector<4x128xbf16>, vector<64x128xf32> -> vector<64x128xf32>
    %63 = arith.addf %56, %62 : vector<64x128xf32>
    %c0_62 = arith.constant 0 : index
    %c0_63 = arith.constant 0 : index
    %64 = vector.load %arg3[%c0_62, %c0_63] : memref<1x128xf32, #tpu.memory_space<vmem>>, vector<1x128xf32>
    %65 = vector.broadcast %64 : vector<1x128xf32> to vector<64x128xf32>
    %66 = arith.addf %63, %65 : vector<64x128xf32>
    %67 = vector.shape_cast %66 : vector<64x128xf32> to vector<8x8x128xf32>
    %c0_64 = arith.constant 0 : index
    %c0_65 = arith.constant 0 : index
    %c0_66 = arith.constant 0 : index
    %c0_67 = arith.constant 0 : index
    %68 = vector.load %arg4[%c0_64, %c0_65, %c0_66, %c0_67] : memref<1x8x8x128xf32, #tpu.memory_space<vmem>>, vector<1x8x8x128xf32>
    %69 = vector.shape_cast %68 : vector<1x8x8x128xf32> to vector<8x8x128xf32>
    %70 = vector.shape_cast %67 : vector<8x8x128xf32> to vector<1x8x8x128xf32>
    tpu.vector_store %arg4[%c0_64, %c0_65, %c0_66, %c0_67], %70 {strides = array<i32>} : memref<1x8x8x128xf32, #tpu.memory_space<vmem>>, vector<1x8x8x128xf32>,
    return
  }
  func.func @transform_0(%arg0: i32) -> (i32, i32, i32, i32) {
    %c0_i32 = arith.constant 0 : i32
    %c0_i32_0 = arith.constant 0 : i32
    %c0_i32_1 = arith.constant 0 : i32
    %c0_i32_2 = arith.constant 0 : i32
    return %arg0, %c0_i32, %c0_i32_0, %c0_i32_1 : i32, i32, i32, i32
  }
  func.func @transform_1(%arg0: i32) -> (i32, i32, i32) {
    %c0_i32 = arith.constant 0 : i32
    %c0_i32_0 = arith.constant 0 : i32
    %c0_i32_1 = arith.constant 0 : i32
    %c0_i32_2 = arith.constant 0 : i32
    return %c0_i32, %c0_i32_0, %c0_i32_1 : i32, i32, i32
  }
  func.func @transform_2(%arg0: i32) -> (i32, i32) {
    %c0_i32 = arith.constant 0 : i32
    %c0_i32_0 = arith.constant 0 : i32
    %c0_i32_1 = arith.constant 0 : i32
    return %c0_i32, %c0_i32_0 : i32, i32
  }
  func.func @transform_3(%arg0: i32) -> (i32, i32, i32, i32) {
    %c0_i32 = arith.constant 0 : i32
    %c0_i32_0 = arith.constant 0 : i32
    %c0_i32_1 = arith.constant 0 : i32
    %c0_i32_2 = arith.constant 0 : i32
    return %arg0, %c0_i32, %c0_i32_0, %c0_i32_1 : i32, i32, i32, i32
  }
}

</mosaic_0001>

<llo_original>
// kernel: down_block_forward.1
$region0: #{down_block_forward.1}
  #allocation0 [shape = 'u32[]', space=smem, size = 0x4, offset = 0x4, fixed_abs, tag = 'smem constant byte address 0x4 - core index']
  #allocation1 [shape = 'u32[144,128]{1,0:T(1,128)}', space=vmem, size = 0x12000, scoped, tag = 'internal scratch']
  %s0 = inlined_call_operand.vmem [shape: bf16[2,9,9,16], index: 0, kind: input, shape index: {}]
  %s1 = inlined_call_operand.vmem [shape: bf16[9,4,128], index: 1, kind: input, shape index: {}]
  %s2 = inlined_call_operand.vmem [shape: f32[1,128], index: 2, kind: input, shape index: {}]
  %s3 = inlined_call_operand.vmem [shape: f32[2,8,8,128], index: 3, kind: output, shape index: {}]
  %s4 = sld [smem:[#allocation0]]
  $region45: #{down_block_forward.1} parent=0
    _
  %s6 = ssub.s32 1, %s4
  %s7 = scalar_select 0, %s6, %s4
  loop: start=0, step=1, limit=4
  $region2: #{down_block_forward.1} parent=0 // loop_pre_header
    _
  $region3: #{down_block_forward.1} parent=0 // loop_header
    %s9 = sphi 0, %s13
    %p10 = scmp.ge.s32.totalorder %s9, 4
    %s19 = sphi 0, %s21
    %s22 = sphi 0, %s19
    %s23 = sphi 0, %s22
    %s39 = sphi 0, %s23
    %s43 = sphi 0, %s43
    %s45 = sphi 0, %s43
    %s46 = sphi 0, %s45
    %s60 = sphi 0, %s46
    %s64 = sphi 0, %s64
    %s66 = sphi 0, %s64
    %s67 = sphi 0, %s66
    %s81 = sphi 0, %s67
    %s87 = sphi 0, %s89
    %s90 = sphi 0, %s87
    %s91 = sphi 0, %s90
    %s107 = sphi 0, %s91
  $region4: #{down_block_forward.1} parent=0 // loop_header_branch
    %12 = sbr.rel (%p10) target = $region8
  $region5: #{down_block_forward.1} parent=0 // loop_body
    %s14 = ssub.s32 %s9, 1
    %s15 = ssub.s32 %s9, 2
    %s16 = sadd.s32 %s9, 1
    %s17 = ssub.s32 %s9, %s16
    %p18 = scmp.eq.s32.totalorder %s17, 0
    %s20 = sadd.s32 %s19, 1
    %s21 = scalar_select %p18, %s19, %s20
    %p24 = pneg %p18
    %p25 = scmp.eq.s32.totalorder %s9, 1
    %p26 = por %p24, %p25
    %p27 = scmp.ne.s32.totalorder %s19, %s22
    %p28 = scmp.eq.s32.totalorder %s9, 0
    %p29 = por %p27, %p28
    %p30 = scmp.ne.s32.totalorder %s19, %s22
    %p31 = scmp.eq.s32.totalorder %s14, 1
    %p32 = por %p30, %p31
    %p33 = scmp.ne.s32.totalorder %s22, %s23
    %p34 = scmp.eq.s32.totalorder %s14, 0
    %p35 = por %p33, %p34
    %p36 = scmp.ne.s32.totalorder %s22, %s23
    %p37 = scmp.eq.s32.totalorder %s15, 1
    %p38 = por %p36, %p37
    %p40 = scmp.ne.s32.totalorder %s23, %s39
    %p41 = scmp.eq.s32.totalorder %s15, 0
    %p42 = por %p40, %p41
    %s44 = sadd.s32 %s43, 1
    %p47 = scmp.eq.s32.totalorder %s9, 1
    %p48 = scmp.ne.s32.totalorder %s43, %s45
    %p49 = scmp.eq.s32.totalorder %s9, 0
    %p50 = por %p48, %p49
    %p51 = scmp.ne.s32.totalorder %s43, %s45
    %p52 = scmp.eq.s32.totalorder %s14, 1
    %p53 = por %p51, %p52
    %p54 = scmp.ne.s32.totalorder %s45, %s46
    %p55 = scmp.eq.s32.totalorder %s14, 0
    %p56 = por %p54, %p55
    %p57 = scmp.ne.s32.totalorder %s45, %s46
    %p58 = scmp.eq.s32.totalorder %s15, 1
    %p59 = por %p57, %p58
    %p61 = scmp.ne.s32.totalorder %s46, %s60
    %p62 = scmp.eq.s32.totalorder %s15, 0
    %p63 = por %p61, %p62
    %s65 = sadd.s32 %s64, 1
    %p68 = scmp.eq.s32.totalorder %s9, 1
    %p69 = scmp.ne.s32.totalorder %s64, %s66
    %p70 = scmp.eq.s32.totalorder %s9, 0
    %p71 = por %p69, %p70
    %p72 = scmp.ne.s32.totalorder %s64, %s66
    %p73 = scmp.eq.s32.totalorder %s14, 1
    %p74 = por %p72, %p73
    %p75 = scmp.ne.s32.totalorder %s66, %s67
    %p76 = scmp.eq.s32.totalorder %s14, 0
    %p77 = por %p75, %p76
    %p78 = scmp.ne.s32.totalorder %s66, %s67
    %p79 = scmp.eq.s32.totalorder %s15, 1
    %p80 = por %p78, %p79
    %p82 = scmp.ne.s32.totalorder %s67, %s81
    %p83 = scmp.eq.s32.totalorder %s15, 0
    %p84 = por %p82, %p83
    %s85 = ssub.s32 %s9, %s16
    %p86 = scmp.eq.s32.totalorder %s85, 0
    %s88 = sadd.s32 %s87, 1
    %s89 = scalar_select %p86, %s87, %s88
    %p92 = pneg %p86
    %p93 = scmp.eq.s32.totalorder %s9, 1
    %p94 = por %p92, %p93
    %p95 = scmp.ne.s32.totalorder %s87, %s90
    %p96 = scmp.eq.s32.totalorder %s9, 0
    %p97 = por %p95, %p96
    %p98 = scmp.ne.s32.totalorder %s87, %s90
    %p99 = scmp.eq.s32.totalorder %s14, 1
    %p100 = por %p98, %p99
    %p101 = scmp.ne.s32.totalorder %s90, %s91
    %p102 = scmp.eq.s32.totalorder %s14, 0
    %p103 = por %p101, %p102
    %p104 = scmp.ne.s32.totalorder %s90, %s91
    %p105 = scmp.eq.s32.totalorder %s15, 1
    %p106 = por %p104, %p105
    %p108 = scmp.ne.s32.totalorder %s91, %s107
    %p109 = scmp.eq.s32.totalorder %s15, 0
    %p110 = por %p108, %p109
    %p111 = scmp.le.s32.totalorder 1, %s9
    %p112 = scmp.lt.s32.totalorder %s9, 3
    %p113 = pnand %p111, %p112
    %p114 = pneg %p113
    // Predicated region
    $region9: #{down_block_forward.1} parent=5 // pred_check
      _
    $region10: #{down_block_forward.1} parent=5 // pred_check_branch
      %116 = sbr.rel (%p113) target = $region12
    $region11: #{down_block_forward.1} parent=5 // pred_region
      %s117 = ssub.s32 %s9, 1
      // Predicated region
      $region13: #{down_block_forward.1} parent=11 // pred_check
        %p118 = pneg %p56
      $region14: #{down_block_forward.1} parent=11 // pred_check_branch
        %120 = sbr.rel (%p118) target = $region16
      $region15: #{down_block_forward.1} parent=11 // pred_region
        _
      $region16: #{down_block_forward.1} parent=11 // pred_fallthru
        _
      // Predicated region
      $region17: #{down_block_forward.1} parent=11 // pred_check
        %p121 = pneg %p77
      $region18: #{down_block_forward.1} parent=11 // pred_check_branch
        %123 = sbr.rel (%p121) target = $region20
      $region19: #{down_block_forward.1} parent=11 // pred_region
        _
      $region20: #{down_block_forward.1} parent=11 // pred_fallthru
        _
    $region12: #{down_block_forward.1} parent=5 // pred_fallthru
      _
    %p124 = scmp.lt.s32.totalorder %s9, 2
    // Predicated region
    $region21: #{down_block_forward.1} parent=5 // pred_check
      %p125 = pneg %p124
    $region22: #{down_block_forward.1} parent=5 // pred_check_branch
      %127 = sbr.rel (%p125) target = $region24
    $region23: #{down_block_forward.1} parent=5 // pred_region
      // Predicated region
      $region25: #{down_block_forward.1} parent=23 // pred_check
        %p128 = pneg %p29
      $region26: #{down_block_forward.1} parent=23 // pred_check_branch
        %130 = sbr.rel (%p128) target = $region28
      $region27: #{down_block_forward.1} parent=23 // pred_region
        %p131 = scmp.lt.s32.totalorder %s9, 1
        %s132 = scalar_select %p131, %s9, 1
        %s133 = smul.addr %s132, 18
        %s134 = smul.addr %s133, 4
        %s135 = scalar_lea.vmem %s0, %s134
      $region28: #{down_block_forward.1} parent=23 // pred_fallthru
        _
    $region24: #{down_block_forward.1} parent=5 // pred_fallthru
      _
    %p136 = scmp.le.s32.totalorder 1, %s9
    %p137 = scmp.lt.s32.totalorder %s9, 3
    %p138 = pnand %p136, %p137
    %p139 = pneg %p138
    // Predicated region
    $region29: #{down_block_forward.1} parent=5 // pred_check
      _
    $region30: #{down_block_forward.1} parent=5 // pred_check_branch
      %141 = sbr.rel (%p138) target = $region32
    $region31: #{down_block_forward.1} parent=5 // pred_region
      %s142 = ssub.s32 %s9, 1
      %p143 = scmp.lt.s32.totalorder %s14, 1
      %s144 = scalar_select %p143, %s14, 1
      %s145 = smul.addr %s144, 18
      %s146 = smul.addr %s145, 4
      %s147 = scalar_lea.vmem %s0, %s146
      %p148 = pneg %p35
      %p149 = pneg %p32
      %p150 = pneg %p56
      %p151 = pneg %p53
      %p152 = pneg %p77
      %p153 = pneg %p74
      %p154 = pneg %p103
      %p155 = pneg %p100
      %p156 = scmp.lt.s32.totalorder %s14, 1
      %s157 = scalar_select %p156, %s14, 1
      %s158 = smul.addr %s157, 8
      %s159 = smul.addr %s158, 8
      %s160 = scalar_lea.vmem %s3, %s159
      %p161 = scmp.lt.s32.totalorder %s14, 1
      %s162 = scalar_select %p161, %s14, 1
      %s163 = smul.addr %s162, 18
      %s164 = smul.addr %s163, 4
      %s165 = scalar_lea.vmem %s0, %s164
      %p166 = scmp.lt.s32.totalorder %s14, 1
      %s167 = scalar_select %p166, %s14, 1
      %s168 = smul.addr %s167, 8
      %s169 = smul.addr %s168, 8
      %s170 = scalar_lea.vmem %s3, %s169
      %v172 = vld [vmem:[%s165] sm:$0xf]
      %v173 = vld [vmem:[%s165 + $0x8] sm:$0xf]
      %v174 = vld [vmem:[%s165 + $0x10] sm:$0xf]
      %v175 = vld [vmem:[%s165 + $0x18] sm:$0xf]
      %v176 = vld [vmem:[%s165 + $0x20] sm:$0xf]
      %v177 = vld [vmem:[%s165 + $0x28] sm:$0xf]
      %v178 = vld [vmem:[%s165 + $0x30] sm:$0xf]
      %v179 = vld [vmem:[%s165 + $0x38] sm:$0xf]
      %v180 = vld [vmem:[%s1] sm:$0x3]
      %s181 = scalar_lea.vmem %s1, 2
      %v182 = vld [vmem:[%s181] sm:$0x3]
      %v191 = vunpack.c.l.b16 %v172
      %v192 = vunpack.c.l.b16 %v173
      %v193 = vunpack.c.l.b16 %v174
      %v194 = vunpack.c.l.b16 %v175
      %v195 = vunpack.c.l.b16 %v176
      %v196 = vunpack.c.l.b16 %v177
      %v197 = vunpack.c.l.b16 %v178
      %v198 = vunpack.c.l.b16 %v179
      %v199 = vpack.c.b16 %v192, %v191
      %v200 = vpack.c.b16 %v194, %v193
      %v201 = vpack.c.b16 %v196, %v195
      %v202 = vpack.c.b16 %v198, %v197
      %203 = vrot.lane.b32.xlu0 %v199, 124
      %v204 = vpop.permute.xlu0 %203
      %205 = vrot.lane.b32.xlu0 %v200, 124
      %v206 = vpop.permute.xlu0 %205
      %207 = vrot.lane.b32.xlu0 %v201, 124
      %v208 = vpop.permute.xlu0 %207
      %209 = vrot.lane.b32.xlu0 %v202, 124
      %v210 = vpop.permute.xlu0 %209
      %vm211 = vcmask 31744
      %v213 = vsel %vm211, %v204, 0
      %v216 = vsel %vm211, %v206, 0
      %v219 = vsel %vm211, %v208, 0
      %v222 = vsel %vm211, %v210, 0
      %vm224 = vcmask 1041408
      %v226 = vsel %vm224, %v182, 0
      %228 = vmatprep.subr.bf16.mxu0 0
      %229 = vmatpush1.bf16.msra.mxu0 %v226
      %230 = vmatprep.subr.bf16.mxu0 0
      %231 = vmatpush1.bf16.msra.mxu0 0
      %232 = vmatprep.subr.bf16.mxu0 0
      %233 = vmatpush1.bf16.msra.mxu0 0
      %234 = vmatprep.subr.bf16.mxu0 0
      %235 = vmatpush1.bf16.msra.mxu0 0
      %236 = vmatprep.subr.bf16.mxu0 0
      %237 = vmatpush1.bf16.msra.mxu0 0
      %238 = vmatprep.subr.bf16.mxu0 0
      %239 = vmatpush1.bf16.msra.mxu0 0
      %240 = vmatprep.subr.bf16.mxu0 0
      %241 = vmatpush1.bf16.msra.mxu0 0
      %242 = vmatprep.subr.bf16.mxu0 0
      %243 = vmatpush1.bf16.msra.mxu0 0
      %244 = vmatprep.subr.bf16.mxu0 0
      %245 = vmatpush1.bf16.msra.mxu0 0
      %246 = vmatprep.subr.bf16.mxu0 0
      %247 = vmatpush1.bf16.msra.mxu0 0
      %248 = vmatprep.subr.bf16.mxu0 0
      %249 = vmatpush1.bf16.msra.mxu0 0
      %250 = vmatprep.subr.bf16.mxu0 0
      %251 = vmatpush1.bf16.msra.mxu0 0
      %252 = vmatprep.subr.bf16.mxu0 0
      %253 = vmatpush1.bf16.msra.mxu0 0
      %254 = vmatprep.subr.bf16.mxu0 0
      %255 = vmatpush1.bf16.msra.mxu0 0
      %256 = vmatprep.subr.bf16.mxu0 0
      %257 = vmatpush1.bf16.msra.mxu0 0
      %258 = vmatprep.subr.bf16.mxu0 0
      %259 = vmatpush1.bf16.msra.mxu0 0
      %260 = vmatprep.mubr.bf16.mxu0 0
      %261 = vmatmul.mubr.bf16.gmra.mrb[0].mxu0 %v213
      %v262 = vpop.f32.mrb[0].mxu0
      %v263 = vadd.f32 0.0, %v262
      %v264 = vpop.f32.mrb[0].mxu0
      %v265 = vpop.f32.mrb[0].mxu0
      %v266 = vadd.f32 0.0, %v265
      %v267 = vpop.f32.mrb[0].mxu0
      %268 = vmatprep.mubr.bf16.mxu0 0
      %269 = vmatmul.mubr.bf16.gmra.mrb[0].mxu0 %v216
      %v270 = vpop.f32.mrb[0].mxu0
      %v271 = vadd.f32 0.0, %v270
      %v272 = vpop.f32.mrb[0].mxu0
      %v273 = vpop.f32.mrb[0].mxu0
      %v274 = vadd.f32 0.0, %v273
      %v275 = vpop.f32.mrb[0].mxu0
      %276 = vmatprep.mubr.bf16.mxu0 0
      %277 = vmatmul.mubr.bf16.gmra.mrb[0].mxu0 %v219
      %v278 = vpop.f32.mrb[0].mxu0
      %v279 = vadd.f32 0.0, %v278
      %v280 = vpop.f32.mrb[0].mxu0
      %v281 = vpop.f32.mrb[0].mxu0
      %v282 = vadd.f32 0.0, %v281
      %v283 = vpop.f32.mrb[0].mxu0
      %284 = vmatprep.mubr.bf16.mxu0 0
      %285 = vmatmul.mubr.bf16.gmra.mrb[0].mxu0 %v222
      %v286 = vpop.f32.mrb[0].mxu0
      %v287 = vadd.f32 0.0, %v286
      %v288 = vpop.f32.mrb[0].mxu0
      %v289 = vpop.f32.mrb[0].mxu0
      %v290 = vadd.f32 0.0, %v289
      %v291 = vpop.f32.mrb[0].mxu0
      %292 = vdwg.mxu0
      %v294 = vsel %vm211, %v199, 0
      %v297 = vsel %vm211, %v200, 0
      %v300 = vsel %vm211, %v201, 0
      %v303 = vsel %vm211, %v202, 0
      %v306 = vsel %vm224, %v180, 0
      %308 = vmatprep.subr.bf16.mxu0 0
      %309 = vmatpush1.bf16.msra.mxu0 %v306
      %310 = vmatprep.subr.bf16.mxu0 0
      %311 = vmatpush1.bf16.msra.mxu0 0
      %312 = vmatprep.subr.bf16.mxu0 0
      %313 = vmatpush1.bf16.msra.mxu0 0
      %314 = vmatprep.subr.bf16.mxu0 0
      %315 = vmatpush1.bf16.msra.mxu0 0
      %316 = vmatprep.subr.bf16.mxu0 0
      %317 = vmatpush1.bf16.msra.mxu0 0
      %318 = vmatprep.subr.bf16.mxu0 0
      %319 = vmatpush1.bf16.msra.mxu0 0
      %320 = vmatprep.subr.bf16.mxu0 0
      %321 = vmatpush1.bf16.msra.mxu0 0
      %322 = vmatprep.subr.bf16.mxu0 0
      %323 = vmatpush1.bf16.msra.mxu0 0
      %324 = vmatprep.subr.bf16.mxu0 0
      %325 = vmatpush1.bf16.msra.mxu0 0
      %326 = vmatprep.subr.bf16.mxu0 0
      %327 = vmatpush1.bf16.msra.mxu0 0
      %328 = vmatprep.subr.bf16.mxu0 0
      %329 = vmatpush1.bf16.msra.mxu0 0
      %330 = vmatprep.subr.bf16.mxu0 0
      %331 = vmatpush1.bf16.msra.mxu0 0
      %332 = vmatprep.subr.bf16.mxu0 0
      %333 = vmatpush1.bf16.msra.mxu0 0
      %334 = vmatprep.subr.bf16.mxu0 0
      %335 = vmatpush1.bf16.msra.mxu0 0
      %336 = vmatprep.subr.bf16.mxu0 0
      %337 = vmatpush1.bf16.msra.mxu0 0
      %338 = vmatprep.subr.bf16.mxu0 0
      %339 = vmatpush1.bf16.msra.mxu0 0
      %340 = vmatprep.mubr.bf16.mxu0 0
      %341 = vmatmul.mubr.bf16.gmra.mrb[0].mxu0 %v294
      %v342 = vpop.f32.mrb[0].mxu0
      %v343 = vadd.f32 %v263, %v342
      %v344 = vpop.f32.mrb[0].mxu0
      %v345 = vpop.f32.mrb[0].mxu0
      %v346 = vadd.f32 %v266, %v345
      %v347 = vpop.f32.mrb[0].mxu0
      %348 = vmatprep.mubr.bf16.mxu0 0
      %349 = vmatmul.mubr.bf16.gmra.mrb[0].mxu0 %v297
      %v350 = vpop.f32.mrb[0].mxu0
      %v351 = vadd.f32 %v271, %v350
      %v352 = vpop.f32.mrb[0].mxu0
      %v353 = vpop.f32.mrb[0].mxu0
      %v354 = vadd.f32 %v274, %v353
      %v355 = vpop.f32.mrb[0].mxu0
      %356 = vmatprep.mubr.bf16.mxu0 0
      %357 = vmatmul.mubr.bf16.gmra.mrb[0].mxu0 %v300
      %v358 = vpop.f32.mrb[0].mxu0
      %v359 = vadd.f32 %v279, %v358
      %v360 = vpop.f32.mrb[0].mxu0
      %v361 = vpop.f32.mrb[0].mxu0
      %v362 = vadd.f32 %v282, %v361
      %v363 = vpop.f32.mrb[0].mxu0
      %364 = vmatprep.mubr.bf16.mxu0 0
      %365 = vmatmul.mubr.bf16.gmra.mrb[0].mxu0 %v303
      %v366 = vpop.f32.mrb[0].mxu0
      %v367 = vadd.f32 %v287, %v366
      %v368 = vpop.f32.mrb[0].mxu0
      %v369 = vpop.f32.mrb[0].mxu0
      %v370 = vadd.f32 %v290, %v369
      %v371 = vpop.f32.mrb[0].mxu0
      %372 = vdwg.mxu0
      %v373 = vld [vmem:[%s165] sm:$0xf]
      %v374 = vld [vmem:[%s165 + $0x4] sm:$0x1]
      %v375 = vld [vmem:[%s165 + $0x8] sm:$0xf]
      %v376 = vld [vmem:[%s165 + $0xc] sm:$0x1]
      %v377 = vld [vmem:[%s165 + $0x10] sm:$0xf]
      %v378 = vld [vmem:[%s165 + $0x14] sm:$0x1]
      %v379 = vld [vmem:[%s165 + $0x18] sm:$0xf]
      %v380 = vld [vmem:[%s165 + $0x1c] sm:$0x1]
      %v381 = vld [vmem:[%s165 + $0x20] sm:$0xf]
      %v382 = vld [vmem:[%s165 + $0x24] sm:$0x1]
      %v383 = vld [vmem:[%s165 + $0x28] sm:$0xf]
      %v384 = vld [vmem:[%s165 + $0x2c] sm:$0x1]
      %v385 = vld [vmem:[%s165 + $0x30] sm:$0xf]
      %v386 = vld [vmem:[%s165 + $0x34] sm:$0x1]
      %v387 = vld [vmem:[%s165 + $0x38] sm:$0xf]
      %v388 = vld [vmem:[%s165 + $0x3c] sm:$0x1]
      %vm389 = vsmask.f32 3328
      %vm390 = vsmask.f32 7440
      %vm391 = vmor %vm389, %vm390
      %v393 = vshrl.u32 %v373, 16
      %v395 = vrot.slane %v393, 4
      %v396 = vshll.u32 %v373, 16
      %v398 = vrot.slane %v396, 5
      %v399 = vor.u32 %v395, %v398
      %v400 = vrot.slane %v399, 4
      %v402 = vshll.u32 %v374, 16
      %v404 = vrot.slane %v402, 5
      %v405 = vsel %vm391, %v400, %v404
      %v407 = vshrl.u32 %v375, 16
      %v409 = vrot.slane %v407, 4
      %v410 = vshll.u32 %v375, 16
      %v412 = vrot.slane %v410, 5
      %v413 = vor.u32 %v409, %v412
      %v414 = vrot.slane %v413, 4
      %v416 = vshll.u32 %v376, 16
      %v418 = vrot.slane %v416, 5
      %v419 = vsel %vm391, %v414, %v418
      %v421 = vshrl.u32 %v377, 16
      %v423 = vrot.slane %v421, 4
      %v424 = vshll.u32 %v377, 16
      %v426 = vrot.slane %v424, 5
      %v427 = vor.u32 %v423, %v426
      %v428 = vrot.slane %v427, 4
      %v430 = vshll.u32 %v378, 16
      %v432 = vrot.slane %v430, 5
      %v433 = vsel %vm391, %v428, %v432
      %v435 = vshrl.u32 %v379, 16
      %v437 = vrot.slane %v435, 4
      %v438 = vshll.u32 %v379, 16
      %v440 = vrot.slane %v438, 5
      %v441 = vor.u32 %v437, %v440
      %v442 = vrot.slane %v441, 4
      %v444 = vshll.u32 %v380, 16
      %v446 = vrot.slane %v444, 5
      %v447 = vsel %vm391, %v442, %v446
      %v449 = vshrl.u32 %v381, 16
      %v451 = vrot.slane %v449, 4
      %v452 = vshll.u32 %v381, 16
      %v454 = vrot.slane %v452, 5
      %v455 = vor.u32 %v451, %v454
      %v456 = vrot.slane %v455, 4
      %v458 = vshll.u32 %v382, 16
      %v460 = vrot.slane %v458, 5
      %v461 = vsel %vm391, %v456, %v460
      %v463 = vshrl.u32 %v383, 16
      %v465 = vrot.slane %v463, 4
      %v466 = vshll.u32 %v383, 16
      %v468 = vrot.slane %v466, 5
      %v469 = vor.u32 %v465, %v468
      %v470 = vrot.slane %v469, 4
      %v472 = vshll.u32 %v384, 16
      %v474 = vrot.slane %v472, 5
      %v475 = vsel %vm391, %v470, %v474
      %v477 = vshrl.u32 %v385, 16
      %v479 = vrot.slane %v477, 4
      %v480 = vshll.u32 %v385, 16
      %v482 = vrot.slane %v480, 5
      %v483 = vor.u32 %v479, %v482
      %v484 = vrot.slane %v483, 4
      %v486 = vshll.u32 %v386, 16
      %v488 = vrot.slane %v486, 5
      %v489 = vsel %vm391, %v484, %v488
      %v491 = vshrl.u32 %v387, 16
      %v493 = vrot.slane %v491, 4
      %v494 = vshll.u32 %v387, 16
      %v496 = vrot.slane %v494, 5
      %v497 = vor.u32 %v493, %v496
      %v498 = vrot.slane %v497, 4
      %v500 = vshll.u32 %v388, 16
      %v502 = vrot.slane %v500, 5
      %v503 = vsel %vm391, %v498, %v502
      %s504 = scalar_lea.vmem %s1, 4
      %v505 = vld [vmem:[%s504] sm:$0x3]
      %v506 = vunpack.c.l.b16 %v405
      %v507 = vunpack.c.l.b16 %v419
      %v508 = vunpack.c.l.b16 %v433
      %v509 = vunpack.c.l.b16 %v447
      %v510 = vunpack.c.l.b16 %v461
      %v511 = vunpack.c.l.b16 %v475
      %v512 = vunpack.c.l.b16 %v489
      %v513 = vunpack.c.l.b16 %v503
      %v514 = vpack.c.b16 %v507, %v506
      %v515 = vpack.c.b16 %v509, %v508
      %v516 = vpack.c.b16 %v511, %v510
      %v517 = vpack.c.b16 %v513, %v512
      %v519 = vsel %vm211, %v514, 0
      %v522 = vsel %vm211, %v515, 0
      %v525 = vsel %vm211, %v516, 0
      %v528 = vsel %vm211, %v517, 0
      %v531 = vsel %vm224, %v505, 0
      %533 = vmatprep.subr.bf16.mxu0 0
      %534 = vmatpush1.bf16.msra.mxu0 %v531
      %535 = vmatprep.subr.bf16.mxu0 0
      %536 = vmatpush1.bf16.msra.mxu0 0
      %537 = vmatprep.subr.bf16.mxu0 0
      %538 = vmatpush1.bf16.msra.mxu0 0
      %539 = vmatprep.subr.bf16.mxu0 0
      %540 = vmatpush1.bf16.msra.mxu0 0
      %541 = vmatprep.subr.bf16.mxu0 0
      %542 = vmatpush1.bf16.msra.mxu0 0
      %543 = vmatprep.subr.bf16.mxu0 0
      %544 = vmatpush1.bf16.msra.mxu0 0
      %545 = vmatprep.subr.bf16.mxu0 0
      %546 = vmatpush1.bf16.msra.mxu0 0
      %547 = vmatprep.subr.bf16.mxu0 0
      %548 = vmatpush1.bf16.msra.mxu0 0
      %549 = vmatprep.subr.bf16.mxu0 0
      %550 = vmatpush1.bf16.msra.mxu0 0
      %551 = vmatprep.subr.bf16.mxu0 0
      %552 = vmatpush1.bf16.msra.mxu0 0
      %553 = vmatprep.subr.bf16.mxu0 0
      %554 = vmatpush1.bf16.msra.mxu0 0
      %555 = vmatprep.subr.bf16.mxu0 0
      %556 = vmatpush1.bf16.msra.mxu0 0
      %557 = vmatprep.subr.bf16.mxu0 0
      %558 = vmatpush1.bf16.msra.mxu0 0
      %559 = vmatprep.subr.bf16.mxu0 0
      %560 = vmatpush1.bf16.msra.mxu0 0
      %561 = vmatprep.subr.bf16.mxu0 0
      %562 = vmatpush1.bf16.msra.mxu0 0
      %563 = vmatprep.subr.bf16.mxu0 0
      %564 = vmatpush1.bf16.msra.mxu0 0
      %565 = vmatprep.mubr.bf16.mxu0 0
      %566 = vmatmul.mubr.bf16.gmra.mrb[0].mxu0 %v519
      %v567 = vpop.f32.mrb[0].mxu0
      %v568 = vadd.f32 0.0, %v567
      %v569 = vpop.f32.mrb[0].mxu0
      %v570 = vpop.f32.mrb[0].mxu0
      %v571 = vadd.f32 0.0, %v570
      %v572 = vpop.f32.mrb[0].mxu0
      %573 = vmatprep.mubr.bf16.mxu0 0
      %574 = vmatmul.mubr.bf16.gmra.mrb[0].mxu0 %v522
      %v575 = vpop.f32.mrb[0].mxu0
      %v576 = vadd.f32 0.0, %v575
      %v577 = vpop.f32.mrb[0].mxu0
      %v578 = vpop.f32.mrb[0].mxu0
      %v579 = vadd.f32 0.0, %v578
      %v580 = vpop.f32.mrb[0].mxu0
      %581 = vmatprep.mubr.bf16.mxu0 0
      %582 = vmatmul.mubr.bf16.gmra.mrb[0].mxu0 %v525
      %v583 = vpop.f32.mrb[0].mxu0
      %v584 = vadd.f32 0.0, %v583
      %v585 = vpop.f32.mrb[0].mxu0
      %v586 = vpop.f32.mrb[0].mxu0
      %v587 = vadd.f32 0.0, %v586
      %v588 = vpop.f32.mrb[0].mxu0
      %589 = vmatprep.mubr.bf16.mxu0 0
      %590 = vmatmul.mubr.bf16.gmra.mrb[0].mxu0 %v528
      %v591 = vpop.f32.mrb[0].mxu0
      %v592 = vadd.f32 0.0, %v591
      %v593 = vpop.f32.mrb[0].mxu0
      %v594 = vpop.f32.mrb[0].mxu0
      %v595 = vadd.f32 0.0, %v594
      %v596 = vpop.f32.mrb[0].mxu0
      %597 = vdwg.mxu0
      %v598 = vadd.f32 %v343, %v568
      %v599 = vadd.f32 %v346, %v571
      %v600 = vadd.f32 %v351, %v576
      %v601 = vadd.f32 %v354, %v579
      %v602 = vadd.f32 %v359, %v584
      %v603 = vadd.f32 %v362, %v587
      %v604 = vadd.f32 %v367, %v592
      %v605 = vadd.f32 %v370, %v595
      %s606 = scalar_lea.vmem %s1, 6
      %v607 = vld [vmem:[%s606] sm:$0x3]
      %608 = vrot.lane.b32.xlu0 %v199, 120
      %v609 = vpop.permute.xlu0 %608
      %610 = vrot.lane.b32.xlu0 %v200, 120
      %v611 = vpop.permute.xlu0 %610
      %612 = vrot.lane.b32.xlu0 %v201, 120
      %v613 = vpop.permute.xlu0 %612
      %614 = vrot.lane.b32.xlu0 %v202, 120
      %v615 = vpop.permute.xlu0 %614
      %v617 = vsel %vm211, %v609, 0
      %v620 = vsel %vm211, %v611, 0
      %v623 = vsel %vm211, %v613, 0
      %v626 = vsel %vm211, %v615, 0
      %v629 = vsel %vm224, %v607, 0
      %631 = vmatprep.subr.bf16.mxu0 0
      %632 = vmatpush1.bf16.msra.mxu0 %v629
      %633 = vmatprep.subr.bf16.mxu0 0
      %634 = vmatpush1.bf16.msra.mxu0 0
      %635 = vmatprep.subr.bf16.mxu0 0
      %636 = vmatpush1.bf16.msra.mxu0 0
      %637 = vmatprep.subr.bf16.mxu0 0
      %638 = vmatpush1.bf16.msra.mxu0 0
      %639 = vmatprep.subr.bf16.mxu0 0
      %640 = vmatpush1.bf16.msra.mxu0 0
      %641 = vmatprep.subr.bf16.mxu0 0
      %642 = vmatpush1.bf16.msra.mxu0 0
      %643 = vmatprep.subr.bf16.mxu0 0
      %644 = vmatpush1.bf16.msra.mxu0 0
      %645 = vmatprep.subr.bf16.mxu0 0
      %646 = vmatpush1.bf16.msra.mxu0 0
      %647 = vmatprep.subr.bf16.mxu0 0
      %648 = vmatpush1.bf16.msra.mxu0 0
      %649 = vmatprep.subr.bf16.mxu0 0
      %650 = vmatpush1.bf16.msra.mxu0 0
      %651 = vmatprep.subr.bf16.mxu0 0
      %652 = vmatpush1.bf16.msra.mxu0 0
      %653 = vmatprep.subr.bf16.mxu0 0
      %654 = vmatpush1.bf16.msra.mxu0 0
      %655 = vmatprep.subr.bf16.mxu0 0
      %656 = vmatpush1.bf16.msra.mxu0 0
      %657 = vmatprep.subr.bf16.mxu0 0
      %658 = vmatpush1.bf16.msra.mxu0 0
      %659 = vmatprep.subr.bf16.mxu0 0
      %660 = vmatpush1.bf16.msra.mxu0 0
      %661 = vmatprep.subr.bf16.mxu0 0
      %662 = vmatpush1.bf16.msra.mxu0 0
      %663 = vmatprep.mubr.bf16.mxu0 0
      %664 = vmatmul.mubr.bf16.gmra.mrb[0].mxu0 %v617
      %v665 = vpop.f32.mrb[0].mxu0
      %v666 = vadd.f32 0.0, %v665
      %v667 = vpop.f32.mrb[0].mxu0
      %v668 = vpop.f32.mrb[0].mxu0
      %v669 = vadd.f32 0.0, %v668
      %v670 = vpop.f32.mrb[0].mxu0
      %671 = vmatprep.mubr.bf16.mxu0 0
      %672 = vmatmul.mubr.bf16.gmra.mrb[0].mxu0 %v620
      %v673 = vpop.f32.mrb[0].mxu0
      %v674 = vadd.f32 0.0, %v673
      %v675 = vpop.f32.mrb[0].mxu0
      %v676 = vpop.f32.mrb[0].mxu0
      %v677 = vadd.f32 0.0, %v676
      %v678 = vpop.f32.mrb[0].mxu0
      %679 = vmatprep.mubr.bf16.mxu0 0
      %680 = vmatmul.mubr.bf16.gmra.mrb[0].mxu0 %v623
      %v681 = vpop.f32.mrb[0].mxu0
      %v682 = vadd.f32 0.0, %v681
      %v683 = vpop.f32.mrb[0].mxu0
      %v684 = vpop.f32.mrb[0].mxu0
      %v685 = vadd.f32 0.0, %v684
      %v686 = vpop.f32.mrb[0].mxu0
      %687 = vmatprep.mubr.bf16.mxu0 0
      %688 = vmatmul.mubr.bf16.gmra.mrb[0].mxu0 %v626
      %v689 = vpop.f32.mrb[0].mxu0
      %v690 = vadd.f32 0.0, %v689
      %v691 = vpop.f32.mrb[0].mxu0
      %v692 = vpop.f32.mrb[0].mxu0
      %v693 = vadd.f32 0.0, %v692
      %v694 = vpop.f32.mrb[0].mxu0
      %695 = vdwg.mxu0
      %v696 = vadd.f32 %v598, %v666
      %v697 = vadd.f32 %v599, %v669
      %v698 = vadd.f32 %v600, %v674
      %v699 = vadd.f32 %v601, %v677
      %v700 = vadd.f32 %v602, %v682
      %v701 = vadd.f32 %v603, %v685
      %v702 = vadd.f32 %v604, %v690
      %v703 = vadd.f32 %v605, %v693
      %s704 = scalar_lea.vmem %s1, 8
      %v705 = vld [vmem:[%s704] sm:$0x3]
      %706 = vrot.lane.b32.xlu0 %v199, 116
      %v707 = vpop.permute.xlu0 %706
      %708 = vrot.lane.b32.xlu0 %v200, 116
      %v709 = vpop.permute.xlu0 %708
      %710 = vrot.lane.b32.xlu0 %v201, 116
      %v711 = vpop.permute.xlu0 %710
      %712 = vrot.lane.b32.xlu0 %v202, 116
      %v713 = vpop.permute.xlu0 %712
      %v715 = vsel %vm211, %v707, 0
      %v718 = vsel %vm211, %v709, 0
      %v721 = vsel %vm211, %v711, 0
      %v724 = vsel %vm211, %v713, 0
      %v727 = vsel %vm224, %v705, 0
      %729 = vmatprep.subr.bf16.mxu0 0
      %730 = vmatpush1.bf16.msra.mxu0 %v727
      %731 = vmatprep.subr.bf16.mxu0 0
      %732 = vmatpush1.bf16.msra.mxu0 0
      %733 = vmatprep.subr.bf16.mxu0 0
      %734 = vmatpush1.bf16.msra.mxu0 0
      %735 = vmatprep.subr.bf16.mxu0 0
      %736 = vmatpush1.bf16.msra.mxu0 0
      %737 = vmatprep.subr.bf16.mxu0 0
      %738 = vmatpush1.bf16.msra.mxu0 0
      %739 = vmatprep.subr.bf16.mxu0 0
      %740 = vmatpush1.bf16.msra.mxu0 0
      %741 = vmatprep.subr.bf16.mxu0 0
      %742 = vmatpush1.bf16.msra.mxu0 0
      %743 = vmatprep.subr.bf16.mxu0 0
      %744 = vmatpush1.bf16.msra.mxu0 0
      %745 = vmatprep.subr.bf16.mxu0 0
      %746 = vmatpush1.bf16.msra.mxu0 0
      %747 = vmatprep.subr.bf16.mxu0 0
      %748 = vmatpush1.bf16.msra.mxu0 0
      %749 = vmatprep.subr.bf16.mxu0 0
      %750 = vmatpush1.bf16.msra.mxu0 0
      %751 = vmatprep.subr.bf16.mxu0 0
      %752 = vmatpush1.bf16.msra.mxu0 0
      %753 = vmatprep.subr.bf16.mxu0 0
      %754 = vmatpush1.bf16.msra.mxu0 0
      %755 = vmatprep.subr.bf16.mxu0 0
      %756 = vmatpush1.bf16.msra.mxu0 0
      %757 = vmatprep.subr.bf16.mxu0 0
      %758 = vmatpush1.bf16.msra.mxu0 0
      %759 = vmatprep.subr.bf16.mxu0 0
      %760 = vmatpush1.bf16.msra.mxu0 0
      %761 = vmatprep.mubr.bf16.mxu0 0
      %762 = vmatmul.mubr.bf16.gmra.mrb[0].mxu0 %v715
      %v763 = vpop.f32.mrb[0].mxu0
      %v764 = vadd.f32 0.0, %v763
      %v765 = vpop.f32.mrb[0].mxu0
      %v766 = vpop.f32.mrb[0].mxu0
      %v767 = vadd.f32 0.0, %v766
      %v768 = vpop.f32.mrb[0].mxu0
      %769 = vmatprep.mubr.bf16.mxu0 0
      %770 = vmatmul.mubr.bf16.gmra.mrb[0].mxu0 %v718
      %v771 = vpop.f32.mrb[0].mxu0
      %v772 = vadd.f32 0.0, %v771
      %v773 = vpop.f32.mrb[0].mxu0
      %v774 = vpop.f32.mrb[0].mxu0
      %v775 = vadd.f32 0.0, %v774
      %v776 = vpop.f32.mrb[0].mxu0
      %777 = vmatprep.mubr.bf16.mxu0 0
      %778 = vmatmul.mubr.bf16.gmra.mrb[0].mxu0 %v721
      %v779 = vpop.f32.mrb[0].mxu0
      %v780 = vadd.f32 0.0, %v779
      %v781 = vpop.f32.mrb[0].mxu0
      %v782 = vpop.f32.mrb[0].mxu0
      %v783 = vadd.f32 0.0, %v782
      %v784 = vpop.f32.mrb[0].mxu0
      %785 = vmatprep.mubr.bf16.mxu0 0
      %786 = vmatmul.mubr.bf16.gmra.mrb[0].mxu0 %v724
      %v787 = vpop.f32.mrb[0].mxu0
      %v788 = vadd.f32 0.0, %v787
      %v789 = vpop.f32.mrb[0].mxu0
      %v790 = vpop.f32.mrb[0].mxu0
      %v791 = vadd.f32 0.0, %v790
      %v792 = vpop.f32.mrb[0].mxu0
      %793 = vdwg.mxu0
      %v794 = vadd.f32 %v696, %v764
      %v795 = vadd.f32 %v697, %v767
      %v796 = vadd.f32 %v698, %v772
      %v797 = vadd.f32 %v699, %v775
      %v798 = vadd.f32 %v700, %v780
      %v799 = vadd.f32 %v701, %v783
      %v800 = vadd.f32 %v702, %v788
      %v801 = vadd.f32 %v703, %v791
      %s802 = scalar_lea.vmem %s1, 10
      %v803 = vld [vmem:[%s802] sm:$0x3]
      %804 = vrot.lane.b32.xlu0 %v514, 120
      %v805 = vpop.permute.xlu0 %804
      %806 = vrot.lane.b32.xlu0 %v515, 120
      %v807 = vpop.permute.xlu0 %806
      %808 = vrot.lane.b32.xlu0 %v516, 120
      %v809 = vpop.permute.xlu0 %808
      %810 = vrot.lane.b32.xlu0 %v517, 120
      %v811 = vpop.permute.xlu0 %810
      %v813 = vsel %vm211, %v805, 0
      %v816 = vsel %vm211, %v807, 0
      %v819 = vsel %vm211, %v809, 0
      %v822 = vsel %vm211, %v811, 0
      %v825 = vsel %vm224, %v803, 0
      %827 = vmatprep.subr.bf16.mxu0 0
      %828 = vmatpush1.bf16.msra.mxu0 %v825
      %829 = vmatprep.subr.bf16.mxu0 0
      %830 = vmatpush1.bf16.msra.mxu0 0
      %831 = vmatprep.subr.bf16.mxu0 0
      %832 = vmatpush1.bf16.msra.mxu0 0
      %833 = vmatprep.subr.bf16.mxu0 0
      %834 = vmatpush1.bf16.msra.mxu0 0
      %835 = vmatprep.subr.bf16.mxu0 0
      %836 = vmatpush1.bf16.msra.mxu0 0
      %837 = vmatprep.subr.bf16.mxu0 0
      %838 = vmatpush1.bf16.msra.mxu0 0
      %839 = vmatprep.subr.bf16.mxu0 0
      %840 = vmatpush1.bf16.msra.mxu0 0
      %841 = vmatprep.subr.bf16.mxu0 0
      %842 = vmatpush1.bf16.msra.mxu0 0
      %843 = vmatprep.subr.bf16.mxu0 0
      %844 = vmatpush1.bf16.msra.mxu0 0
      %845 = vmatprep.subr.bf16.mxu0 0
      %846 = vmatpush1.bf16.msra.mxu0 0
      %847 = vmatprep.subr.bf16.mxu0 0
      %848 = vmatpush1.bf16.msra.mxu0 0
      %849 = vmatprep.subr.bf16.mxu0 0
      %850 = vmatpush1.bf16.msra.mxu0 0
      %851 = vmatprep.subr.bf16.mxu0 0
      %852 = vmatpush1.bf16.msra.mxu0 0
      %853 = vmatprep.subr.bf16.mxu0 0
      %854 = vmatpush1.bf16.msra.mxu0 0
      %855 = vmatprep.subr.bf16.mxu0 0
      %856 = vmatpush1.bf16.msra.mxu0 0
      %857 = vmatprep.subr.bf16.mxu0 0
      %858 = vmatpush1.bf16.msra.mxu0 0
      %859 = vmatprep.mubr.bf16.mxu0 0
      %860 = vmatmul.mubr.bf16.gmra.mrb[0].mxu0 %v813
      %v861 = vpop.f32.mrb[0].mxu0
      %v862 = vadd.f32 0.0, %v861
      %v863 = vpop.f32.mrb[0].mxu0
      %v864 = vpop.f32.mrb[0].mxu0
      %v865 = vadd.f32 0.0, %v864
      %v866 = vpop.f32.mrb[0].mxu0
      %867 = vmatprep.mubr.bf16.mxu0 0
      %868 = vmatmul.mubr.bf16.gmra.mrb[0].mxu0 %v816
      %v869 = vpop.f32.mrb[0].mxu0
      %v870 = vadd.f32 0.0, %v869
      %v871 = vpop.f32.mrb[0].mxu0
      %v872 = vpop.f32.mrb[0].mxu0
      %v873 = vadd.f32 0.0, %v872
      %v874 = vpop.f32.mrb[0].mxu0
      %875 = vmatprep.mubr.bf16.mxu0 0
      %876 = vmatmul.mubr.bf16.gmra.mrb[0].mxu0 %v819
      %v877 = vpop.f32.mrb[0].mxu0
      %v878 = vadd.f32 0.0, %v877
      %v879 = vpop.f32.mrb[0].mxu0
      %v880 = vpop.f32.mrb[0].mxu0
      %v881 = vadd.f32 0.0, %v880
      %v882 = vpop.f32.mrb[0].mxu0
      %883 = vmatprep.mubr.bf16.mxu0 0
      %884 = vmatmul.mubr.bf16.gmra.mrb[0].mxu0 %v822
      %v885 = vpop.f32.mrb[0].mxu0
      %v886 = vadd.f32 0.0, %v885
      %v887 = vpop.f32.mrb[0].mxu0
      %v888 = vpop.f32.mrb[0].mxu0
      %v889 = vadd.f32 0.0, %v888
      %v890 = vpop.f32.mrb[0].mxu0
      %891 = vdwg.mxu0
      %v892 = vadd.f32 %v794, %v862
      %v893 = vadd.f32 %v795, %v865
      %v894 = vadd.f32 %v796, %v870
      %v895 = vadd.f32 %v797, %v873
      %v896 = vadd.f32 %v798, %v878
      %v897 = vadd.f32 %v799, %v881
      %v898 = vadd.f32 %v800, %v886
      %v899 = vadd.f32 %v801, %v889
      %s900 = scalar_lea.vmem %s165, 8
      %v901 = vld [vmem:[%s900] sm:$0xf]
      %v902 = vld [vmem:[%s900 + $0x8] sm:$0xf]
      %v903 = vld [vmem:[%s900 + $0x10] sm:$0xf]
      %v904 = vld [vmem:[%s900 + $0x18] sm:$0xf]
      %v905 = vld [vmem:[%s900 + $0x20] sm:$0xf]
      %v906 = vld [vmem:[%s900 + $0x28] sm:$0xf]
      %v907 = vld [vmem:[%s900 + $0x30] sm:$0xf]
      %v908 = vld [vmem:[%s900 + $0x38] sm:$0xf]
      %s909 = scalar_lea.vmem %s1, 12
      %v910 = vld [vmem:[%s909] sm:$0x3]
      %v919 = vunpack.c.l.b16 %v901
      %v920 = vunpack.c.l.b16 %v902
      %v921 = vunpack.c.l.b16 %v903
      %v922 = vunpack.c.l.b16 %v904
      %v923 = vunpack.c.l.b16 %v905
      %v924 = vunpack.c.l.b16 %v906
      %v925 = vunpack.c.l.b16 %v907
      %v926 = vunpack.c.l.b16 %v908
      %v927 = vpack.c.b16 %v920, %v919
      %v928 = vpack.c.b16 %v922, %v921
      %v929 = vpack.c.b16 %v924, %v923
      %v930 = vpack.c.b16 %v926, %v925
      %v932 = vsel %vm211, %v927, 0
      %v935 = vsel %vm211, %v928, 0
      %v938 = vsel %vm211, %v929, 0
      %v941 = vsel %vm211, %v930, 0
      %v944 = vsel %vm224, %v910, 0
      %946 = vmatprep.subr.bf16.mxu0 0
      %947 = vmatpush1.bf16.msra.mxu0 %v944
      %948 = vmatprep.subr.bf16.mxu0 0
      %949 = vmatpush1.bf16.msra.mxu0 0
      %950 = vmatprep.subr.bf16.mxu0 0
      %951 = vmatpush1.bf16.msra.mxu0 0
      %952 = vmatprep.subr.bf16.mxu0 0
      %953 = vmatpush1.bf16.msra.mxu0 0
      %954 = vmatprep.subr.bf16.mxu0 0
      %955 = vmatpush1.bf16.msra.mxu0 0
      %956 = vmatprep.subr.bf16.mxu0 0
      %957 = vmatpush1.bf16.msra.mxu0 0
      %958 = vmatprep.subr.bf16.mxu0 0
      %959 = vmatpush1.bf16.msra.mxu0 0
      %960 = vmatprep.subr.bf16.mxu0 0
      %961 = vmatpush1.bf16.msra.mxu0 0
      %962 = vmatprep.subr.bf16.mxu0 0
      %963 = vmatpush1.bf16.msra.mxu0 0
      %964 = vmatprep.subr.bf16.mxu0 0
      %965 = vmatpush1.bf16.msra.mxu0 0
      %966 = vmatprep.subr.bf16.mxu0 0
      %967 = vmatpush1.bf16.msra.mxu0 0
      %968 = vmatprep.subr.bf16.mxu0 0
      %969 = vmatpush1.bf16.msra.mxu0 0
      %970 = vmatprep.subr.bf16.mxu0 0
      %971 = vmatpush1.bf16.msra.mxu0 0
      %972 = vmatprep.subr.bf16.mxu0 0
      %973 = vmatpush1.bf16.msra.mxu0 0
      %974 = vmatprep.subr.bf16.mxu0 0
      %975 = vmatpush1.bf16.msra.mxu0 0
      %976 = vmatprep.subr.bf16.mxu0 0
      %977 = vmatpush1.bf16.msra.mxu0 0
      %978 = vmatprep.mubr.bf16.mxu0 0
      %979 = vmatmul.mubr.bf16.gmra.mrb[0].mxu0 %v932
      %v980 = vpop.f32.mrb[0].mxu0
      %v981 = vadd.f32 0.0, %v980
      %v982 = vpop.f32.mrb[0].mxu0
      %v983 = vpop.f32.mrb[0].mxu0
      %v984 = vadd.f32 0.0, %v983
      %v985 = vpop.f32.mrb[0].mxu0
      %986 = vmatprep.mubr.bf16.mxu0 0
      %987 = vmatmul.mubr.bf16.gmra.mrb[0].mxu0 %v935
      %v988 = vpop.f32.mrb[0].mxu0
      %v989 = vadd.f32 0.0, %v988
      %v990 = vpop.f32.mrb[0].mxu0
      %v991 = vpop.f32.mrb[0].mxu0
      %v992 = vadd.f32 0.0, %v991
      %v993 = vpop.f32.mrb[0].mxu0
      %994 = vmatprep.mubr.bf16.mxu0 0
      %995 = vmatmul.mubr.bf16.gmra.mrb[0].mxu0 %v938
      %v996 = vpop.f32.mrb[0].mxu0
      %v997 = vadd.f32 0.0, %v996
      %v998 = vpop.f32.mrb[0].mxu0
      %v999 = vpop.f32.mrb[0].mxu0
      %v1000 = vadd.f32 0.0, %v999
      %v1001 = vpop.f32.mrb[0].mxu0
      %1002 = vmatprep.mubr.bf16.mxu0 0
      %1003 = vmatmul.mubr.bf16.gmra.mrb[0].mxu0 %v941
      %v1004 = vpop.f32.mrb[0].mxu0
      %v1005 = vadd.f32 0.0, %v1004
      %v1006 = vpop.f32.mrb[0].mxu0
      %v1007 = vpop.f32.mrb[0].mxu0
      %v1008 = vadd.f32 0.0, %v1007
      %v1009 = vpop.f32.mrb[0].mxu0
      %1010 = vdwg.mxu0
      %v1011 = vadd.f32 %v892, %v981
      %v1012 = vadd.f32 %v893, %v984
      %v1013 = vadd.f32 %v894, %v989
      %v1014 = vadd.f32 %v895, %v992
      %v1015 = vadd.f32 %v896, %v997
      %v1016 = vadd.f32 %v897, %v1000
      %v1017 = vadd.f32 %v898, %v1005
      %v1018 = vadd.f32 %v899, %v1008
      %s1019 = scalar_lea.vmem %s1, 14
      %v1020 = vld [vmem:[%s1019] sm:$0x3]
      %1021 = vrot.lane.b32.xlu0 %v927, 124
      %v1022 = vpop.permute.xlu0 %1021
      %1023 = vrot.lane.b32.xlu0 %v928, 124
      %v1024 = vpop.permute.xlu0 %1023
      %1025 = vrot.lane.b32.xlu0 %v929, 124
      %v1026 = vpop.permute.xlu0 %1025
      %1027 = vrot.lane.b32.xlu0 %v930, 124
      %v1028 = vpop.permute.xlu0 %1027
      %v1030 = vsel %vm211, %v1022, 0
      %v1033 = vsel %vm211, %v1024, 0
      %v1036 = vsel %vm211, %v1026, 0
      %v1039 = vsel %vm211, %v1028, 0
      %v1042 = vsel %vm224, %v1020, 0
      %1044 = vmatprep.subr.bf16.mxu0 0
      %1045 = vmatpush1.bf16.msra.mxu0 %v1042
      %1046 = vmatprep.subr.bf16.mxu0 0
      %1047 = vmatpush1.bf16.msra.mxu0 0
      %1048 = vmatprep.subr.bf16.mxu0 0
      %1049 = vmatpush1.bf16.msra.mxu0 0
      %1050 = vmatprep.subr.bf16.mxu0 0
      %1051 = vmatpush1.bf16.msra.mxu0 0
      %1052 = vmatprep.subr.bf16.mxu0 0
      %1053 = vmatpush1.bf16.msra.mxu0 0
      %1054 = vmatprep.subr.bf16.mxu0 0
      %1055 = vmatpush1.bf16.msra.mxu0 0
      %1056 = vmatprep.subr.bf16.mxu0 0
      %1057 = vmatpush1.bf16.msra.mxu0 0
      %1058 = vmatprep.subr.bf16.mxu0 0
      %1059 = vmatpush1.bf16.msra.mxu0 0
      %1060 = vmatprep.subr.bf16.mxu0 0
      %1061 = vmatpush1.bf16.msra.mxu0 0
      %1062 = vmatprep.subr.bf16.mxu0 0
      %1063 = vmatpush1.bf16.msra.mxu0 0
      %1064 = vmatprep.subr.bf16.mxu0 0
      %1065 = vmatpush1.bf16.msra.mxu0 0
      %1066 = vmatprep.subr.bf16.mxu0 0
      %1067 = vmatpush1.bf16.msra.mxu0 0
      %1068 = vmatprep.subr.bf16.mxu0 0
      %1069 = vmatpush1.bf16.msra.mxu0 0
      %1070 = vmatprep.subr.bf16.mxu0 0
      %1071 = vmatpush1.bf16.msra.mxu0 0
      %1072 = vmatprep.subr.bf16.mxu0 0
      %1073 = vmatpush1.bf16.msra.mxu0 0
      %1074 = vmatprep.subr.bf16.mxu0 0
      %1075 = vmatpush1.bf16.msra.mxu0 0
      %1076 = vmatprep.mubr.bf16.mxu0 0
      %1077 = vmatmul.mubr.bf16.gmra.mrb[0].mxu0 %v1030
      %v1078 = vpop.f32.mrb[0].mxu0
      %v1079 = vadd.f32 0.0, %v1078
      %v1080 = vpop.f32.mrb[0].mxu0
      %v1081 = vpop.f32.mrb[0].mxu0
      %v1082 = vadd.f32 0.0, %v1081
      %v1083 = vpop.f32.mrb[0].mxu0
      %1084 = vmatprep.mubr.bf16.mxu0 0
      %1085 = vmatmul.mubr.bf16.gmra.mrb[0].mxu0 %v1033
      %v1086 = vpop.f32.mrb[0].mxu0
      %v1087 = vadd.f32 0.0, %v1086
      %v1088 = vpop.f32.mrb[0].mxu0
      %v1089 = vpop.f32.mrb[0].mxu0
      %v1090 = vadd.f32 0.0, %v1089
      %v1091 = vpop.f32.mrb[0].mxu0
      %1092 = vmatprep.mubr.bf16.mxu0 0
      %1093 = vmatmul.mubr.bf16.gmra.mrb[0].mxu0 %v1036
      %v1094 = vpop.f32.mrb[0].mxu0
      %v1095 = vadd.f32 0.0, %v1094
      %v1096 = vpop.f32.mrb[0].mxu0
      %v1097 = vpop.f32.mrb[0].mxu0
      %v1098 = vadd.f32 0.0, %v1097
      %v1099 = vpop.f32.mrb[0].mxu0
      %1100 = vmatprep.mubr.bf16.mxu0 0
      %1101 = vmatmul.mubr.bf16.gmra.mrb[0].mxu0 %v1039
      %v1102 = vpop.f32.mrb[0].mxu0
      %v1103 = vadd.f32 0.0, %v1102
      %v1104 = vpop.f32.mrb[0].mxu0
      %v1105 = vpop.f32.mrb[0].mxu0
      %v1106 = vadd.f32 0.0, %v1105
      %v1107 = vpop.f32.mrb[0].mxu0
      %1108 = vdwg.mxu0
      %v1109 = vadd.f32 %v1011, %v1079
      %v1110 = vadd.f32 %v1012, %v1082
      %v1111 = vadd.f32 %v1013, %v1087
      %v1112 = vadd.f32 %v1014, %v1090
      %v1113 = vadd.f32 %v1015, %v1095
      %v1114 = vadd.f32 %v1016, %v1098
      %v1115 = vadd.f32 %v1017, %v1103
      %v1116 = vadd.f32 %v1018, %v1106
      %v1117 = vld [vmem:[%s900] sm:$0xf]
      %v1118 = vld [vmem:[%s900 + $0x4] sm:$0x1]
      %v1119 = vld [vmem:[%s900 + $0x8] sm:$0xf]
      %v1120 = vld [vmem:[%s900 + $0xc] sm:$0x1]
      %v1121 = vld [vmem:[%s900 + $0x10] sm:$0xf]
      %v1122 = vld [vmem:[%s900 + $0x14] sm:$0x1]
      %v1123 = vld [vmem:[%s900 + $0x18] sm:$0xf]
      %v1124 = vld [vmem:[%s900 + $0x1c] sm:$0x1]
      %v1125 = vld [vmem:[%s900 + $0x20] sm:$0xf]
      %v1126 = vld [vmem:[%s900 + $0x24] sm:$0x1]
      %v1127 = vld [vmem:[%s900 + $0x28] sm:$0xf]
      %v1128 = vld [vmem:[%s900 + $0x2c] sm:$0x1]
      %v1129 = vld [vmem:[%s900 + $0x30] sm:$0xf]
      %v1130 = vld [vmem:[%s900 + $0x34] sm:$0x1]
      %v1131 = vld [vmem:[%s900 + $0x38] sm:$0xf]
      %v1132 = vld [vmem:[%s900 + $0x3c] sm:$0x1]
      %v1134 = vshrl.u32 %v1117, 16
      %v1136 = vrot.slane %v1134, 4
      %v1137 = vshll.u32 %v1117, 16
      %v1139 = vrot.slane %v1137, 5
      %v1140 = vor.u32 %v1136, %v1139
      %v1141 = vrot.slane %v1140, 4
      %v1143 = vshll.u32 %v1118, 16
      %v1145 = vrot.slane %v1143, 5
      %v1146 = vsel %vm391, %v1141, %v1145
      %v1148 = vshrl.u32 %v1119, 16
      %v1150 = vrot.slane %v1148, 4
      %v1151 = vshll.u32 %v1119, 16
      %v1153 = vrot.slane %v1151, 5
      %v1154 = vor.u32 %v1150, %v1153
      %v1155 = vrot.slane %v1154, 4
      %v1157 = vshll.u32 %v1120, 16
      %v1159 = vrot.slane %v1157, 5
      %v1160 = vsel %vm391, %v1155, %v1159
      %v1162 = vshrl.u32 %v1121, 16
      %v1164 = vrot.slane %v1162, 4
      %v1165 = vshll.u32 %v1121, 16
      %v1167 = vrot.slane %v1165, 5
      %v1168 = vor.u32 %v1164, %v1167
      %v1169 = vrot.slane %v1168, 4
      %v1171 = vshll.u32 %v1122, 16
      %v1173 = vrot.slane %v1171, 5
      %v1174 = vsel %vm391, %v1169, %v1173
      %v1176 = vshrl.u32 %v1123, 16
      %v1178 = vrot.slane %v1176, 4
      %v1179 = vshll.u32 %v1123, 16
      %v1181 = vrot.slane %v1179, 5
      %v1182 = vor.u32 %v1178, %v1181
      %v1183 = vrot.slane %v1182, 4
      %v1185 = vshll.u32 %v1124, 16
      %v1187 = vrot.slane %v1185, 5
      %v1188 = vsel %vm391, %v1183, %v1187
      %v1190 = vshrl.u32 %v1125, 16
      %v1192 = vrot.slane %v1190, 4
      %v1193 = vshll.u32 %v1125, 16
      %v1195 = vrot.slane %v1193, 5
      %v1196 = vor.u32 %v1192, %v1195
      %v1197 = vrot.slane %v1196, 4
      %v1199 = vshll.u32 %v1126, 16
      %v1201 = vrot.slane %v1199, 5
      %v1202 = vsel %vm391, %v1197, %v1201
      %v1204 = vshrl.u32 %v1127, 16
      %v1206 = vrot.slane %v1204, 4
      %v1207 = vshll.u32 %v1127, 16
      %v1209 = vrot.slane %v1207, 5
      %v1210 = vor.u32 %v1206, %v1209
      %v1211 = vrot.slane %v1210, 4
      %v1213 = vshll.u32 %v1128, 16
      %v1215 = vrot.slane %v1213, 5
      %v1216 = vsel %vm391, %v1211, %v1215
      %v1218 = vshrl.u32 %v1129, 16
      %v1220 = vrot.slane %v1218, 4
      %v1221 = vshll.u32 %v1129, 16
      %v1223 = vrot.slane %v1221, 5
      %v1224 = vor.u32 %v1220, %v1223
      %v1225 = vrot.slane %v1224, 4
      %v1227 = vshll.u32 %v1130, 16
      %v1229 = vrot.slane %v1227, 5
      %v1230 = vsel %vm391, %v1225, %v1229
      %v1232 = vshrl.u32 %v1131, 16
      %v1234 = vrot.slane %v1232, 4
      %v1235 = vshll.u32 %v1131, 16
      %v1237 = vrot.slane %v1235, 5
      %v1238 = vor.u32 %v1234, %v1237
      %v1239 = vrot.slane %v1238, 4
      %v1241 = vshll.u32 %v1132, 16
      %v1243 = vrot.slane %v1241, 5
      %v1244 = vsel %vm391, %v1239, %v1243
      %s1245 = scalar_lea.vmem %s1, 16
      %v1246 = vld [vmem:[%s1245] sm:$0x3]
      %v1247 = vunpack.c.l.b16 %v1146
      %v1248 = vunpack.c.l.b16 %v1160
      %v1249 = vunpack.c.l.b16 %v1174
      %v1250 = vunpack.c.l.b16 %v1188
      %v1251 = vunpack.c.l.b16 %v1202
      %v1252 = vunpack.c.l.b16 %v1216
      %v1253 = vunpack.c.l.b16 %v1230
      %v1254 = vunpack.c.l.b16 %v1244
      %v1255 = vpack.c.b16 %v1248, %v1247
      %v1256 = vpack.c.b16 %v1250, %v1249
      %v1257 = vpack.c.b16 %v1252, %v1251
      %v1258 = vpack.c.b16 %v1254, %v1253
      %v1260 = vsel %vm211, %v1255, 0
      %v1263 = vsel %vm211, %v1256, 0
      %v1266 = vsel %vm211, %v1257, 0
      %v1269 = vsel %vm211, %v1258, 0
      %v1272 = vsel %vm224, %v1246, 0
      %1274 = vmatprep.subr.bf16.mxu0 0
      %1275 = vmatpush1.bf16.msra.mxu0 %v1272
      %1276 = vmatprep.subr.bf16.mxu0 0
      %1277 = vmatpush1.bf16.msra.mxu0 0
      %1278 = vmatprep.subr.bf16.mxu0 0
      %1279 = vmatpush1.bf16.msra.mxu0 0
      %1280 = vmatprep.subr.bf16.mxu0 0
      %1281 = vmatpush1.bf16.msra.mxu0 0
      %1282 = vmatprep.subr.bf16.mxu0 0
      %1283 = vmatpush1.bf16.msra.mxu0 0
      %1284 = vmatprep.subr.bf16.mxu0 0
      %1285 = vmatpush1.bf16.msra.mxu0 0
      %1286 = vmatprep.subr.bf16.mxu0 0
      %1287 = vmatpush1.bf16.msra.mxu0 0
      %1288 = vmatprep.subr.bf16.mxu0 0
      %1289 = vmatpush1.bf16.msra.mxu0 0
      %1290 = vmatprep.subr.bf16.mxu0 0
      %1291 = vmatpush1.bf16.msra.mxu0 0
      %1292 = vmatprep.subr.bf16.mxu0 0
      %1293 = vmatpush1.bf16.msra.mxu0 0
      %1294 = vmatprep.subr.bf16.mxu0 0
      %1295 = vmatpush1.bf16.msra.mxu0 0
      %1296 = vmatprep.subr.bf16.mxu0 0
      %1297 = vmatpush1.bf16.msra.mxu0 0
      %1298 = vmatprep.subr.bf16.mxu0 0
      %1299 = vmatpush1.bf16.msra.mxu0 0
      %1300 = vmatprep.subr.bf16.mxu0 0
      %1301 = vmatpush1.bf16.msra.mxu0 0
      %1302 = vmatprep.subr.bf16.mxu0 0
      %1303 = vmatpush1.bf16.msra.mxu0 0
      %1304 = vmatprep.subr.bf16.mxu0 0
      %1305 = vmatpush1.bf16.msra.mxu0 0
      %1306 = vmatprep.mubr.bf16.mxu0 0
      %1307 = vmatmul.mubr.bf16.gmra.mrb[0].mxu0 %v1260
      %v1308 = vpop.f32.mrb[0].mxu0
      %v1309 = vadd.f32 0.0, %v1308
      %v1310 = vpop.f32.mrb[0].mxu0
      %v1311 = vpop.f32.mrb[0].mxu0
      %v1312 = vadd.f32 0.0, %v1311
      %v1313 = vpop.f32.mrb[0].mxu0
      %1314 = vmatprep.mubr.bf16.mxu0 0
      %1315 = vmatmul.mubr.bf16.gmra.mrb[0].mxu0 %v1263
      %v1316 = vpop.f32.mrb[0].mxu0
      %v1317 = vadd.f32 0.0, %v1316
      %v1318 = vpop.f32.mrb[0].mxu0
      %v1319 = vpop.f32.mrb[0].mxu0
      %v1320 = vadd.f32 0.0, %v1319
      %v1321 = vpop.f32.mrb[0].mxu0
      %1322 = vmatprep.mubr.bf16.mxu0 0
      %1323 = vmatmul.mubr.bf16.gmra.mrb[0].mxu0 %v1266
      %v1324 = vpop.f32.mrb[0].mxu0
      %v1325 = vadd.f32 0.0, %v1324
      %v1326 = vpop.f32.mrb[0].mxu0
      %v1327 = vpop.f32.mrb[0].mxu0
      %v1328 = vadd.f32 0.0, %v1327
      %v1329 = vpop.f32.mrb[0].mxu0
      %1330 = vmatprep.mubr.bf16.mxu0 0
      %1331 = vmatmul.mubr.bf16.gmra.mrb[0].mxu0 %v1269
      %v1332 = vpop.f32.mrb[0].mxu0
      %v1333 = vadd.f32 0.0, %v1332
      %v1334 = vpop.f32.mrb[0].mxu0
      %v1335 = vpop.f32.mrb[0].mxu0
      %v1336 = vadd.f32 0.0, %v1335
      %v1337 = vpop.f32.mrb[0].mxu0
      %1338 = vdwg.mxu0
      %v1339 = vadd.f32 %v1109, %v1309
      %v1340 = vadd.f32 %v1110, %v1312
      %v1341 = vadd.f32 %v1111, %v1317
      %v1342 = vadd.f32 %v1112, %v1320
      %v1343 = vadd.f32 %v1113, %v1325
      %v1344 = vadd.f32 %v1114, %v1328
      %v1345 = vadd.f32 %v1115, %v1333
      %v1346 = vadd.f32 %v1116, %v1336
      %v1347 = vld [vmem:[%s2] sm:$0x1]
      %v1349 = vlaneseq
      %v1350 = vshrl.u32 %v1349, 7
      %v1351 = vsub.s32 0, %v1350
      %v1352 = vrot.slane %v1347, %v1351
      %v1354 = vadd.f32 %v1339, %v1352
      %v1355 = vadd.f32 %v1340, %v1352
      %v1356 = vadd.f32 %v1341, %v1352
      %v1357 = vadd.f32 %v1342, %v1352
      %v1358 = vadd.f32 %v1343, %v1352
      %v1359 = vadd.f32 %v1344, %v1352
      %v1360 = vadd.f32 %v1345, %v1352
      %v1361 = vadd.f32 %v1346, %v1352
      %1362 = vst [vmem:[%s170] sm:$0xff] %v1354
      %1363 = vst [vmem:[%s170 + $0x8] sm:$0xff] %v1355
      %1364 = vst [vmem:[%s170 + $0x10] sm:$0xff] %v1356
      %1365 = vst [vmem:[%s170 + $0x18] sm:$0xff] %v1357
      %1366 = vst [vmem:[%s170 + $0x20] sm:$0xff] %v1358
      %1367 = vst [vmem:[%s170 + $0x28] sm:$0xff] %v1359
      %1368 = vst [vmem:[%s170 + $0x30] sm:$0xff] %v1360
      %1369 = vst [vmem:[%s170 + $0x38] sm:$0xff] %v1361
      %p1370 = scmp.lt.s32.totalorder %s14, 1
      %s1371 = scalar_select %p1370, %s14, 1
      %s1372 = smul.addr %s1371, 8
      %s1373 = smul.addr %s1372, 8
      %s1374 = scalar_lea.vmem %s3, %s1373
      // Predicated region
      $region33: #{down_block_forward.1} parent=31 // pred_check
        %p1375 = pneg %p100
      $region34: #{down_block_forward.1} parent=31 // pred_check_branch
        %1377 = sbr.rel (%p1375) target = $region36
      $region35: #{down_block_forward.1} parent=31 // pred_region
        _
      $region36: #{down_block_forward.1} parent=31 // pred_fallthru
        _
    $region32: #{down_block_forward.1} parent=5 // pred_fallthru
      _
    %p1378 = scmp.le.s32.totalorder 2, %s9
    // Predicated region
    $region37: #{down_block_forward.1} parent=5 // pred_check
      %p1379 = pneg %p1378
    $region38: #{down_block_forward.1} parent=5 // pred_check_branch
      %1381 = sbr.rel (%p1379) target = $region40
    $region39: #{down_block_forward.1} parent=5 // pred_region
      %s1382 = ssub.s32 %s9, 2
      // Predicated region
      $region41: #{down_block_forward.1} parent=39 // pred_check
        %p1383 = pneg %p106
      $region42: #{down_block_forward.1} parent=39 // pred_check_branch
        %1385 = sbr.rel (%p1383) target = $region44
      $region43: #{down_block_forward.1} parent=39 // pred_region
        %p1386 = scmp.lt.s32.totalorder %s15, 1
        %s1387 = scalar_select %p1386, %s15, 1
        %s1388 = smul.addr %s1387, 8
        %s1389 = smul.addr %s1388, 8
        %s1390 = scalar_lea.vmem %s3, %s1389
      $region44: #{down_block_forward.1} parent=39 // pred_fallthru
        _
    $region40: #{down_block_forward.1} parent=5 // pred_fallthru
      _
  $region6: #{down_block_forward.1} parent=0 // loop_footer
    %s13 = sadd.s32 1, %s9
  $region7: #{down_block_forward.1} parent=0 // loop_footer_branch
    %8 = sbr.rel target = $region3
  $region8: #{down_block_forward.1} parent=0 // loop_exit
    _

</llo_original>
